<compile_context>
chip_gen: v7x
topology: tpu7x:2x2x1
jax: 0.10.0
libtpu: 0.0.40
codegen_flags: <defaults>
</compile_context>

<pallas_src>
import functools

import jax
import jax.numpy as jnp
from jax.experimental import pallas as pl
from jax.experimental.pallas import tpu as pltpu

_LANE = 128
_SUBLANE = 8


def _round_up(n, m):
    return ((n + m - 1) // m) * m


def _cdiv(a, b):
    return -(-a // b)


def _leaky_relu(h, neg_slope):
    return jnp.where(h > 0, h, neg_slope * h)


def _mlp_kernel(x_ref,
                w1_ref, b1_ref,
                w23_ref, b23_ref,
                w4_ref, b4_ref,
                o_ref,
                *, neg_slope, yp_sub):
    # Fused encode+decode stack, entirely VMEM-resident per batch tile.
    x = x_ref[...]

    # Layer 1: Linear(x_dim -> h1) + LeakyReLU   (f32 accumulation on the MXU)
    h = jnp.dot(x, w1_ref[...], preferred_element_type=jnp.float32) + b1_ref[...]
    h = _leaky_relu(h, neg_slope)

    # Fused middle layers (encode Linear2 ∘ decode Linear1) + LeakyReLU
    d = (jnp.dot(h.astype(w23_ref.dtype), w23_ref[...],
                 preferred_element_type=jnp.float32) + b23_ref[...])
    d = _leaky_relu(d, neg_slope)

    # Final Linear(d1 -> y_dim), lane-padded to 128 for the MXU.
    y = (jnp.dot(d.astype(w4_ref.dtype), w4_ref[...],
                 preferred_element_type=jnp.float32) + b4_ref[...])

    # Transposed, lane-dense store: (128, tile_b) via XLU, keep first yp_sub rows.
    o_ref[...] = y.T[:yp_sub, :].astype(o_ref.dtype)


def deterministic_forward(x, params, *, neg_slope=0.01, tile_b=None,
                          use_bf16=True, out_dtype=jnp.float32):
    """params = ((w1,b1),(w2,b2),(w3,b3),(w4,b4)); wi already transposed to
    (in, out), biases stored as (1, out).  Returns (B, y_dim) in `out_dtype`."""
    (w1, b1), (w2, b2), (w3, b3), (w4, b4) = params
    B, x_dim = x.shape
    y_dim = w4.shape[1]

    # ---- Algebraic fusion of the two middle affine layers (exact up to f32
    #      reassociation: there is no nonlinearity between them). -------------
    w23 = w2 @ w3                 # (h1, d1)
    b23 = b2 @ w3 + b3            # (1,  d1)

    h1, d1 = w1.shape[1], w3.shape[1]
    h1p = _round_up(h1, _LANE)
    d1p = _round_up(d1, _LANE)
    yp_lane = _round_up(y_dim, _LANE)   # matmul output width (MXU lanes)
    yp_sub = _round_up(y_dim, 16)       # transposed-output sublane rows

    def pad2(a, rows, cols):
        r, c = a.shape
        if (r, c) == (rows, cols):
            return a
        return jnp.pad(a, ((0, rows - r), (0, cols - c)))

    w1p, b1p = pad2(w1, x_dim, h1p), pad2(b1, 1, h1p)
    w23p, b23p = pad2(w23, h1p, d1p), pad2(b23, 1, d1p)
    w4p, b4p = pad2(w4, d1p, yp_lane), pad2(b4, 1, yp_lane)

    if use_bf16:
        # bf16 matmul inputs on every generation; biases + accumulation stay f32.
        x = x.astype(jnp.bfloat16)
        w1p, w23p, w4p = (w.astype(jnp.bfloat16) for w in (w1p, w23p, w4p))

    # ---- Batch tiling ---------------------------------------------------------
    Bs = _round_up(B, _SUBLANE)
    if tile_b is None:
        if Bs <= 1024:
            tile_b = Bs                         # single grid step
        else:
            # >=2 steps (v7x megacore), <=4096 rows/step, rebalanced so the
            # ragged-tail padding stays small.
            tile_b = min(4096, _round_up(_cdiv(Bs, 2), _LANE))
            steps = _cdiv(Bs, tile_b)
            tile_b = _round_up(_cdiv(Bs, steps), _LANE)
    else:
        tile_b = _round_up(tile_b, _SUBLANE)
    if tile_b < Bs:
        # Multi-step grid: the transposed output block's lane dim (tile_b) must
        # be a multiple of 128.
        tile_b = _round_up(tile_b, _LANE)

    Bp = _round_up(B, tile_b)
    if Bp != B:
        x = jnp.pad(x, ((0, Bp - B), (0, 0)))

    grid = (Bp // tile_b,)

    x_spec = pl.BlockSpec((tile_b, x_dim), lambda i: (i, 0))
    # Grid-invariant weight/bias blocks: same block every step -> DMA'd once.
    full = lambda a: pl.BlockSpec(a.shape, lambda i: (0, 0))
    out_spec = pl.BlockSpec((yp_sub, tile_b), lambda i: (0, i))

    out_itemsize = jnp.dtype(out_dtype).itemsize
    flops = 2 * Bp * (x_dim * h1p + h1p * d1p + d1p * yp_lane)
    bytes_accessed = (
        x.size * x.dtype.itemsize
        + sum(a.size * a.dtype.itemsize
              for a in (w1p, b1p, w23p, b23p, w4p, b4p))
        + Bp * yp_sub * out_itemsize)

    kernel = functools.partial(_mlp_kernel, neg_slope=neg_slope, yp_sub=yp_sub)

    out_t = pl.pallas_call(
        kernel,
        out_shape=jax.ShapeDtypeStruct((yp_sub, Bp), out_dtype),
        grid_spec=pltpu.PrefetchScalarGridSpec(
            num_scalar_prefetch=0,
            grid=grid,
            in_specs=[
                x_spec,
                full(w1p), full(b1p),
                full(w23p), full(b23p),
                full(w4p), full(b4p),
            ],
            out_specs=out_spec,
        ),
        compiler_params=pltpu.CompilerParams(
            dimension_semantics=("parallel",),
            vmem_limit_bytes=48 * 1024 * 1024),
        cost_estimate=pl.CostEstimate(
            flops=flops, transcendentals=0, bytes_accessed=bytes_accessed),
    )(x, w1p, b1p, w23p, b23p, w4p, b4p)

    # Strip sublane/lane padding and transpose back to (B, y_dim).
    return out_t[:y_dim, :B].T


def _init_linear(key, fan_in, fan_out):
    """Stand-in for PyTorch's default Linear init (uniform +-1/sqrt(fan_in))."""
    kw, kb = jax.random.split(key)
    bound = 1.0 / jnp.sqrt(fan_in)
    w = jax.random.uniform(kw, (fan_in, fan_out), jnp.float32, -bound, bound)
    b = jax.random.uniform(kb, (1, fan_out), jnp.float32, -bound, bound)
    return w, b


def _reference_forward(x, params, neg_slope=0.01):
    (w1, b1), (w2, b2), (w3, b3), (w4, b4) = params
    h = x @ w1 + b1
    h = jnp.where(h > 0, h, neg_slope * h)
    z = h @ w2 + b2
    d = z @ w3 + b3
    d = jnp.where(d > 0, d, neg_slope * d)
    return d @ w4 + b4


if __name__ == "__main__":
    # Module hyperparameters (small, consistent with the MLP forward path):
    #   x_dim=32, z_dims=[64, 16] -> K=16, dec_dims=[64], y_dim=10
    x_dim, z_dims, dec_dims, y_dim = 32, [64, 16], [64], 10
    K = z_dims[-1]
    neg_slope = 0.01  # FLAGS.neg_slope
    # TODO(synk): FLAGS.p_dropout assumed 0 (or eval mode); nn.Dropout is identity and omitted.

    key = jax.random.PRNGKey(0)
    kx, k1, k2, k3, k4 = jax.random.split(key, 5)

    params = (
        _init_linear(k1, x_dim, z_dims[0]),    # encode Linear(32 -> 64)
        _init_linear(k2, z_dims[0], K),        # encode Linear(64 -> 16)
        _init_linear(k3, K, dec_dims[0]),      # decode Linear(16 -> 64)
        _init_linear(k4, dec_dims[0], y_dim),  # decode Linear(64 -> 10)
    )

    # 1) Small batch, f32 path (tight tolerance).
    B = 16
    x = jax.random.normal(kx, (B, x_dim), jnp.float32)
    out = jax.block_until_ready(
        deterministic_forward(x, params, neg_slope=neg_slope, use_bf16=False))
    ref = _reference_forward(x, params, neg_slope)
    assert out.shape == (B, y_dim)
    assert jnp.allclose(out, ref, atol=1e-4, rtol=1e-4), "f32 mismatch vs JAX reference"

    # 2) Non-multiple batch size (exercises batch padding path).
    B2 = 13
    x2 = jax.random.normal(jax.random.fold_in(kx, 1), (B2, x_dim), jnp.float32)
    out2 = jax.block_until_ready(
        deterministic_forward(x2, params, neg_slope=neg_slope, use_bf16=False))
    ref2 = _reference_forward(x2, params, neg_slope)
    assert out2.shape == (B2, y_dim)
    assert jnp.allclose(out2, ref2, atol=1e-4, rtol=1e-4), "ragged-batch mismatch"

    # 3) Multi-step grid (lane-aligned tiles, parallel batch axis / megacore path).
    B3 = 200
    x3 = jax.random.normal(jax.random.fold_in(kx, 2), (B3, x_dim), jnp.float32)
    out3 = jax.block_until_ready(
        deterministic_forward(x3, params, neg_slope=neg_slope,
                              tile_b=128, use_bf16=False))
    ref3 = _reference_forward(x3, params, neg_slope)
    assert out3.shape == (B3, y_dim)
    assert jnp.allclose(out3, ref3, atol=1e-4, rtol=1e-4), "multi-step grid mismatch"

    # 4) Default bf16 matmul inputs + bf16 output (looser tolerance).
    out_bf16 = jax.block_until_ready(
        deterministic_forward(x, params, neg_slope=neg_slope,
                              use_bf16=True, out_dtype=jnp.bfloat16))
    assert out_bf16.shape == (B, y_dim)
    assert jnp.allclose(out_bf16.astype(jnp.float32), ref,
                        atol=1e-1, rtol=1e-1), "bf16 mismatch"

    print("KERNEL_OK")
</pallas_src>

<mosaic_0001>
module attributes {stable_mosaic.version = 11 : i64} {
  func.func @_mlp_kernel(%arg0: i32, %arg1: memref<16x32xf32, #tpu.memory_space<vmem>>, %arg2: memref<32x128xf32, #tpu.memory_space<vmem>>, %arg3: memref<1x128xf32, #tpu.memory_space<vmem>>, %arg4: memref<128x128xf32, #tpu.memory_space<vmem>>, %arg5: memref<1x128xf32, #tpu.memory_space<vmem>>, %arg6: memref<128x128xf32, #tpu.memory_space<vmem>>, %arg7: memref<1x128xf32, #tpu.memory_space<vmem>>, %arg8: memref<16x16xf32, #tpu.memory_space<vmem>>) attributes {dimension_semantics = [#tpu.dimension_semantics<parallel>], iteration_bounds = array<i64: 1>, scalar_prefetch = 0 : i64, scratch_operands = 0 : i64, tpu.core_type = #tpu.core_type<tc>, window_params = [{transform_indices = @transform_0, window_bounds = array<i64: 16, 32>}, {pipeline_mode = #tpu.pipeline_mode<synchronous>, transform_indices = @transform_1, window_bounds = array<i64: 32, 128>}, {pipeline_mode = #tpu.pipeline_mode<synchronous>, transform_indices = @transform_2, window_bounds = array<i64: 1, 128>}, {pipeline_mode = #tpu.pipeline_mode<synchronous>, transform_indices = @transform_3, window_bounds = array<i64: 128, 128>}, {pipeline_mode = #tpu.pipeline_mode<synchronous>, transform_indices = @transform_4, window_bounds = array<i64: 1, 128>}, {pipeline_mode = #tpu.pipeline_mode<synchronous>, transform_indices = @transform_5, window_bounds = array<i64: 128, 128>}, {pipeline_mode = #tpu.pipeline_mode<synchronous>, transform_indices = @transform_6, window_bounds = array<i64: 1, 128>}, {transform_indices = @transform_7, window_bounds = array<i64: 16, 16>}]} {
    %c0 = arith.constant 0 : index
    %c0_0 = arith.constant 0 : index
    %0 = vector.load %arg1[%c0, %c0_0] : memref<16x32xf32, #tpu.memory_space<vmem>>, vector<16x32xf32>
    %c0_1 = arith.constant 0 : index
    %c0_2 = arith.constant 0 : index
    %1 = vector.load %arg2[%c0_1, %c0_2] : memref<32x128xf32, #tpu.memory_space<vmem>>, vector<32x128xf32>
    %cst = arith.constant dense<0.000000e+00> : vector<16x128xf32>
    %2 = tpu.matmul %0, %1, %cst {dimension_numbers = #tpu.dot_dimension_numbers<[1], [0], [0], [1], [0, 0, 1, 1], [], []>} : vector<16x32xf32>, vector<32x128xf32>, vector<16x128xf32> -> vector<16x128xf32>
    %c0_3 = arith.constant 0 : index
    %c0_4 = arith.constant 0 : index
    %3 = vector.load %arg3[%c0_3, %c0_4] : memref<1x128xf32, #tpu.memory_space<vmem>>, vector<1x128xf32>
    %4 = vector.broadcast %3 : vector<1x128xf32> to vector<16x128xf32>
    %5 = arith.addf %2, %4 : vector<16x128xf32>
    %cst_5 = arith.constant 0.000000e+00 : f32
    %6 = vector.broadcast %cst_5 : f32 to vector<16x128xf32>
    %7 = arith.cmpf ogt, %5, %6 : vector<16x128xf32>
    %cst_6 = arith.constant 0.00999999977 : f32
    %8 = vector.broadcast %cst_6 : f32 to vector<16x128xf32>
    %9 = arith.mulf %8, %5 : vector<16x128xf32>
    %10 = arith.select %7, %5, %9 : vector<16x128xi1>, vector<16x128xf32>
    %c0_7 = arith.constant 0 : index
    %c0_8 = arith.constant 0 : index
    %11 = vector.load %arg4[%c0_7, %c0_8] : memref<128x128xf32, #tpu.memory_space<vmem>>, vector<128x128xf32>
    %cst_9 = arith.constant dense<0.000000e+00> : vector<16x128xf32>
    %12 = tpu.matmul %10, %11, %cst_9 {dimension_numbers = #tpu.dot_dimension_numbers<[1], [0], [0], [1], [0, 0, 1, 1], [], []>} : vector<16x128xf32>, vector<128x128xf32>, vector<16x128xf32> -> vector<16x128xf32>
    %c0_10 = arith.constant 0 : index
    %c0_11 = arith.constant 0 : index
    %13 = vector.load %arg5[%c0_10, %c0_11] : memref<1x128xf32, #tpu.memory_space<vmem>>, vector<1x128xf32>
    %14 = vector.broadcast %13 : vector<1x128xf32> to vector<16x128xf32>
    %15 = arith.addf %12, %14 : vector<16x128xf32>
    %cst_12 = arith.constant 0.000000e+00 : f32
    %16 = vector.broadcast %cst_12 : f32 to vector<16x128xf32>
    %17 = arith.cmpf ogt, %15, %16 : vector<16x128xf32>
    %cst_13 = arith.constant 0.00999999977 : f32
    %18 = vector.broadcast %cst_13 : f32 to vector<16x128xf32>
    %19 = arith.mulf %18, %15 : vector<16x128xf32>
    %20 = arith.select %17, %15, %19 : vector<16x128xi1>, vector<16x128xf32>
    %c0_14 = arith.constant 0 : index
    %c0_15 = arith.constant 0 : index
    %21 = vector.load %arg6[%c0_14, %c0_15] : memref<128x128xf32, #tpu.memory_space<vmem>>, vector<128x128xf32>
    %cst_16 = arith.constant dense<0.000000e+00> : vector<16x128xf32>
    %22 = tpu.matmul %20, %21, %cst_16 {dimension_numbers = #tpu.dot_dimension_numbers<[1], [0], [0], [1], [0, 0, 1, 1], [], []>} : vector<16x128xf32>, vector<128x128xf32>, vector<16x128xf32> -> vector<16x128xf32>
    %c0_17 = arith.constant 0 : index
    %c0_18 = arith.constant 0 : index
    %23 = vector.load %arg7[%c0_17, %c0_18] : memref<1x128xf32, #tpu.memory_space<vmem>>, vector<1x128xf32>
    %24 = vector.broadcast %23 : vector<1x128xf32> to vector<16x128xf32>
    %25 = arith.addf %22, %24 : vector<16x128xf32>
    %26 = tpu.transpose %25, [1, 0] : vector<16x128xf32> -> vector<128x16xf32>
    %27 = vector.extract_strided_slice %26 {offsets = [0, 0], sizes = [16, 16], strides = [1, 1]} : vector<128x16xf32> to vector<16x16xf32>
    %c0_19 = arith.constant 0 : index
    %c0_20 = arith.constant 0 : index
    %28 = vector.load %arg8[%c0_19, %c0_20] : memref<16x16xf32, #tpu.memory_space<vmem>>, vector<16x16xf32>
    tpu.vector_store %arg8[%c0_19, %c0_20], %27 {strides = array<i32>} : memref<16x16xf32, #tpu.memory_space<vmem>>, vector<16x16xf32>,
    return
  }
  func.func @transform_0(%arg0: i32) -> (i32, i32) {
    %c0_i32 = arith.constant 0 : i32
    %c0_i32_0 = arith.constant 0 : i32
    return %arg0, %c0_i32 : i32, i32
  }
  func.func @transform_1(%arg0: i32) -> (i32, i32) {
    %c0_i32 = arith.constant 0 : i32
    %c0_i32_0 = arith.constant 0 : i32
    %c0_i32_1 = arith.constant 0 : i32
    return %c0_i32, %c0_i32_0 : i32, i32
  }
  func.func @transform_2(%arg0: i32) -> (i32, i32) {
    %c0_i32 = arith.constant 0 : i32
    %c0_i32_0 = arith.constant 0 : i32
    %c0_i32_1 = arith.constant 0 : i32
    return %c0_i32, %c0_i32_0 : i32, i32
  }
  func.func @transform_3(%arg0: i32) -> (i32, i32) {
    %c0_i32 = arith.constant 0 : i32
    %c0_i32_0 = arith.constant 0 : i32
    %c0_i32_1 = arith.constant 0 : i32
    return %c0_i32, %c0_i32_0 : i32, i32
  }
  func.func @transform_4(%arg0: i32) -> (i32, i32) {
    %c0_i32 = arith.constant 0 : i32
    %c0_i32_0 = arith.constant 0 : i32
    %c0_i32_1 = arith.constant 0 : i32
    return %c0_i32, %c0_i32_0 : i32, i32
  }
  func.func @transform_5(%arg0: i32) -> (i32, i32) {
    %c0_i32 = arith.constant 0 : i32
    %c0_i32_0 = arith.constant 0 : i32
    %c0_i32_1 = arith.constant 0 : i32
    return %c0_i32, %c0_i32_0 : i32, i32
  }
  func.func @transform_6(%arg0: i32) -> (i32, i32) {
    %c0_i32 = arith.constant 0 : i32
    %c0_i32_0 = arith.constant 0 : i32
    %c0_i32_1 = arith.constant 0 : i32
    return %c0_i32, %c0_i32_0 : i32, i32
  }
  func.func @transform_7(%arg0: i32) -> (i32, i32) {
    %c0_i32 = arith.constant 0 : i32
    %c0_i32_0 = arith.constant 0 : i32
    return %c0_i32, %arg0 : i32, i32
  }
}

</mosaic_0001>

<llo_original>
// kernel: tpu_custom_call.1
$region0: #{tpu_custom_call.1}
  #allocation0 [shape = 'u32[]', space=smem, size = 0x4, offset = 0x4, fixed_abs, tag = 'smem constant byte address 0x4 - core index']
  #allocation1 [shape = 'u32[144,128]{1,0:T(1,128)}', space=vmem, size = 0x12000, scoped, tag = 'internal scratch']
  %s0 = inlined_call_operand.hbm [shape: f32[16,32], index: 0, kind: input, shape index: {}]
  %s1 = inlined_call_operand.hbm [shape: f32[32,128], index: 1, kind: input, shape index: {}]
  %s2 = inlined_call_operand.vmem [shape: f32[1,128], index: 2, kind: input, shape index: {}]
  %s3 = inlined_call_operand.hbm [shape: f32[128,128], index: 3, kind: input, shape index: {}]
  %s4 = inlined_call_operand.vmem [shape: f32[1,128], index: 4, kind: input, shape index: {}]
  %s5 = inlined_call_operand.hbm [shape: f32[128,128], index: 5, kind: input, shape index: {}]
  %s6 = inlined_call_operand.vmem [shape: f32[1,128], index: 6, kind: input, shape index: {}]
  %s7 = inlined_call_operand.hbm [shape: f32[16,16], index: 7, kind: output, shape index: {}]
  %s8 = sld [smem:[#allocation0]]
  $region54: #{tpu_custom_call.1} parent=0
    _
  %s10 = ssub.s32 1, %s8
  %s11 = scalar_select 0, %s10, %s8
  $region1: #{tpu_custom_call.1} parent=0
    #allocation2 [shape = 'u8[8192]{0}', space=vmem, size = 0x2000, scoped, tag = 'input window, operand 0, single buffered']
    #allocation3 [shape = 's32[1]{0}', space=sflag, size = 0x4, scoped, tag = 'scoped memory for tpu_custom_call.1']
    #allocation4 [shape = 's32[1]{0}', space=sflag, size = 0x4, scoped, tag = 'scoped memory for tpu_custom_call.1']
    #allocation5 [shape = 'u8[16384]{0}', space=vmem, size = 0x4000, scoped, tag = 'input window, operand 1, single buffered']
    #allocation6 [shape = 's32[1]{0}', space=sflag, size = 0x4, scoped, tag = 'scoped memory for tpu_custom_call.1']
    #allocation7 [shape = 'u8[65536]{0}', space=vmem, size = 0x10000, scoped, tag = 'input window, operand 3, single buffered']
    #allocation8 [shape = 'u8[65536]{0}', space=vmem, size = 0x10000, scoped, tag = 'input window, operand 5, single buffered']
    #allocation9 [shape = 's32[1]{0}', space=sflag, size = 0x4, scoped, tag = 'scoped memory for tpu_custom_call.1']
    #allocation10 [shape = 'u8[8192]{0}', space=vmem, size = 0x2000, scoped, tag = 'output window, operand 0, single buffered']
    %12 = vsyncpa [#allocation3], 0
    %13 = vsyncpa [#allocation6], 0
    %14 = vsyncpa [#allocation9], 0
    %15 = vsyncpa [#allocation4], 0
    // Predicated region
    $region2: #{tpu_custom_call.1} parent=1 // pred_check
      _
    $region3: #{tpu_custom_call.1} parent=1 // pred_check_branch
      %17 = sbr.rel (0) target = $region5
    $region4: #{tpu_custom_call.1} parent=1 // pred_region
      %s19 = ssub.s32 256, 256
      %20 = vsyncadd [#allocation3], %s19
      %s21 = sshll.u32 [#allocation2], 4
      %s22 = int_to_ptr.vmem [resolvable:$true] %s21
      %27 = dma.hbm_to_vmem [thread:$0]  %s0, 256, %s22, [#allocation3], 128, 128, 8
    $region5: #{tpu_custom_call.1} parent=1 // pred_fallthru
      _
    // Predicated region
    $region6: #{tpu_custom_call.1} parent=1 // pred_check
      _
    $region7: #{tpu_custom_call.1} parent=1 // pred_check_branch
      %29 = sbr.rel (0) target = $region9
    $region8: #{tpu_custom_call.1} parent=1 // pred_region
      %s31 = ssub.s32 512, 512
      %32 = vsyncadd [#allocation6], %s31
      %s33 = sshll.u32 [#allocation5], 4
      %s34 = int_to_ptr.vmem [resolvable:$true] %s33
      %39 = dma.hbm_to_vmem [thread:$0]  %s1, 512, %s34, [#allocation6], 128, 128, 8
    $region9: #{tpu_custom_call.1} parent=1 // pred_fallthru
      _
    // Predicated region
    $region10: #{tpu_custom_call.1} parent=1 // pred_check
      _
    $region11: #{tpu_custom_call.1} parent=1 // pred_check_branch
      %41 = sbr.rel (0) target = $region13
    $region12: #{tpu_custom_call.1} parent=1 // pred_region
      _
    $region13: #{tpu_custom_call.1} parent=1 // pred_fallthru
      _
    // Predicated region
    $region14: #{tpu_custom_call.1} parent=1 // pred_check
      _
    $region15: #{tpu_custom_call.1} parent=1 // pred_check_branch
      %43 = sbr.rel (0) target = $region17
    $region16: #{tpu_custom_call.1} parent=1 // pred_region
      %s45 = ssub.s32 2048, 2048
      %46 = vsyncadd [#allocation6], %s45
      %s47 = sshll.u32 [#allocation7], 4
      %s48 = int_to_ptr.vmem [resolvable:$true] %s47
      %53 = dma.hbm_to_vmem [thread:$0]  %s3, 2048, %s48, [#allocation6], 128, 128, 8
    $region17: #{tpu_custom_call.1} parent=1 // pred_fallthru
      _
    // Predicated region
    $region18: #{tpu_custom_call.1} parent=1 // pred_check
      _
    $region19: #{tpu_custom_call.1} parent=1 // pred_check_branch
      %55 = sbr.rel (0) target = $region21
    $region20: #{tpu_custom_call.1} parent=1 // pred_region
      _
    $region21: #{tpu_custom_call.1} parent=1 // pred_fallthru
      _
    // Predicated region
    $region22: #{tpu_custom_call.1} parent=1 // pred_check
      _
    $region23: #{tpu_custom_call.1} parent=1 // pred_check_branch
      %57 = sbr.rel (0) target = $region25
    $region24: #{tpu_custom_call.1} parent=1 // pred_region
      %s59 = ssub.s32 2048, 2048
      %60 = vsyncadd [#allocation9], %s59
      %s61 = sshll.u32 [#allocation8], 4
      %s62 = int_to_ptr.vmem [resolvable:$true] %s61
      %67 = dma.hbm_to_vmem [thread:$0]  %s5, 2048, %s62, [#allocation9], 128, 128, 8
    $region25: #{tpu_custom_call.1} parent=1 // pred_fallthru
      _
    // Predicated region
    $region26: #{tpu_custom_call.1} parent=1 // pred_check
      _
    $region27: #{tpu_custom_call.1} parent=1 // pred_check_branch
      %69 = sbr.rel (0) target = $region29
    $region28: #{tpu_custom_call.1} parent=1 // pred_region
      _
    $region29: #{tpu_custom_call.1} parent=1 // pred_fallthru
      _
    // Predicated region
    $region30: #{tpu_custom_call.1} parent=1 // pred_check
      _
    $region31: #{tpu_custom_call.1} parent=1 // pred_check_branch
      %71 = sbr.rel (0) target = $region33
    $region32: #{tpu_custom_call.1} parent=1 // pred_region
      %72 = dma.done [#allocation3], 256
    $region33: #{tpu_custom_call.1} parent=1 // pred_fallthru
      _
    // Predicated region
    $region34: #{tpu_custom_call.1} parent=1 // pred_check
      _
    $region35: #{tpu_custom_call.1} parent=1 // pred_check_branch
      %74 = sbr.rel (0) target = $region37
    $region36: #{tpu_custom_call.1} parent=1 // pred_region
      %75 = dma.done [#allocation6], 512
    $region37: #{tpu_custom_call.1} parent=1 // pred_fallthru
      _
    // Predicated region
    $region38: #{tpu_custom_call.1} parent=1 // pred_check
      _
    $region39: #{tpu_custom_call.1} parent=1 // pred_check_branch
      %77 = sbr.rel (0) target = $region41
    $region40: #{tpu_custom_call.1} parent=1 // pred_region
      %78 = dma.done [#allocation6], 2048
    $region41: #{tpu_custom_call.1} parent=1 // pred_fallthru
      _
    // Predicated region
    $region42: #{tpu_custom_call.1} parent=1 // pred_check
      _
    $region43: #{tpu_custom_call.1} parent=1 // pred_check_branch
      %80 = sbr.rel (0) target = $region45
    $region44: #{tpu_custom_call.1} parent=1 // pred_region
      %81 = dma.done [#allocation9], 2048
    $region45: #{tpu_custom_call.1} parent=1 // pred_fallthru
      _
    %v82 = vld [vmem:[#allocation2] sm:$0xff]
    %v83 = vld [vmem:[#allocation2 + $0x8] sm:$0xff]
    %v84 = vld [vmem:[#allocation5] sm:$0xff]
    %v85 = vld [vmem:[#allocation5 + $0x8] sm:$0xff]
    %v86 = vld [vmem:[#allocation5 + $0x10] sm:$0xff]
    %v87 = vld [vmem:[#allocation5 + $0x18] sm:$0xff]
    %v88 = vld [vmem:[%s2] sm:$0x1]
    %v90 = vlaneseq
    %v91 = vshrl.u32 %v90, 7
    %v92 = vsub.s32 0, %v91
    %v93 = vrot.slane %v88, %v92
    %vm95 = vcmask 261120
    %v97 = vsel %vm95, %v82, 0
    %v100 = vsel %vm95, %v83, 0
    %102 = vmatprep.subr.mxu0 0.0
    %103 = vmatpush1.msra.mxu0 %v84
    %104 = vmatprep.subr.mxu0 0.0
    %105 = vmatpush1.msra.mxu0 %v85
    %106 = vmatprep.subr.mxu0 0.0
    %107 = vmatpush1.msra.mxu0 %v86
    %108 = vmatprep.subr.mxu0 0.0
    %109 = vmatpush1.msra.mxu0 %v87
    %110 = vmatprep.subr.mxu0 0.0
    %111 = vmatpush1.msra.mxu0 0.0
    %112 = vmatprep.subr.mxu0 0.0
    %113 = vmatpush1.msra.mxu0 0.0
    %114 = vmatprep.subr.mxu0 0.0
    %115 = vmatpush1.msra.mxu0 0.0
    %116 = vmatprep.subr.mxu0 0.0
    %117 = vmatpush1.msra.mxu0 0.0
    %118 = vmatprep.subr.mxu0 0.0
    %119 = vmatpush1.msra.mxu0 0.0
    %120 = vmatprep.subr.mxu0 0.0
    %121 = vmatpush1.msra.mxu0 0.0
    %122 = vmatprep.subr.mxu0 0.0
    %123 = vmatpush1.msra.mxu0 0.0
    %124 = vmatprep.subr.mxu0 0.0
    %125 = vmatpush1.msra.mxu0 0.0
    %126 = vmatprep.subr.mxu0 0.0
    %127 = vmatpush1.msra.mxu0 0.0
    %128 = vmatprep.subr.mxu0 0.0
    %129 = vmatpush1.msra.mxu0 0.0
    %130 = vmatprep.subr.mxu0 0.0
    %131 = vmatpush1.msra.mxu0 0.0
    %132 = vmatprep.subr.mxu0 0.0
    %133 = vmatpush1.msra.mxu0 0.0
    %134 = vmatprep.subr.mxu0 0.0
    %135 = vmatpush1.msra.mxu0 0.0
    %136 = vmatprep.subr.mxu0 0.0
    %137 = vmatpush1.msra.mxu0 0.0
    %138 = vmatprep.subr.mxu0 0.0
    %139 = vmatpush1.msra.mxu0 0.0
    %140 = vmatprep.subr.mxu0 0.0
    %141 = vmatpush1.msra.mxu0 0.0
    %142 = vmatprep.subr.mxu0 0.0
    %143 = vmatpush1.msra.mxu0 0.0
    %144 = vmatprep.subr.mxu0 0.0
    %145 = vmatpush1.msra.mxu0 0.0
    %146 = vmatprep.subr.mxu0 0.0
    %147 = vmatpush1.msra.mxu0 0.0
    %148 = vmatprep.subr.mxu0 0.0
    %149 = vmatpush1.msra.mxu0 0.0
    %150 = vmatprep.subr.mxu0 0.0
    %151 = vmatpush1.msra.mxu0 0.0
    %152 = vmatprep.subr.mxu0 0.0
    %153 = vmatpush1.msra.mxu0 0.0
    %154 = vmatprep.subr.mxu0 0.0
    %155 = vmatpush1.msra.mxu0 0.0
    %156 = vmatprep.subr.mxu0 0.0
    %157 = vmatpush1.msra.mxu0 0.0
    %158 = vmatprep.subr.mxu0 0.0
    %159 = vmatpush1.msra.mxu0 0.0
    %160 = vmatprep.subr.mxu0 0.0
    %161 = vmatpush1.msra.mxu0 0.0
    %162 = vmatprep.subr.mxu0 0.0
    %163 = vmatpush1.msra.mxu0 0.0
    %164 = vmatprep.subr.mxu0 0.0
    %165 = vmatpush1.msra.mxu0 0.0
    %166 = vmatprep.mubr.f32.mxu0 0.0
    %167 = vmatmul.mubr.f32.gmra.mrb[0].mxu0 %v97
    %v168 = vpop.f32.mrb[0].mxu0
    %v169 = vadd.f32 %v93, %v168
    %v170 = vpop.f32.mrb[0].mxu0
    %171 = vmatprep.mubr.f32.mxu0 0.0
    %172 = vmatmul.mubr.f32.gmra.mrb[0].mxu0 %v100
    %v173 = vpop.f32.mrb[0].mxu0
    %v174 = vadd.f32 %v93, %v173
    %v175 = vpop.f32.mrb[0].mxu0
    %176 = vdwg.mxu0
    %vm177 = vcmp.gt.f32.partialorder %v169, 0.0
    %vm178 = vcmp.gt.f32.partialorder %v174, 0.0
    %v179 = vmul.f32 %v169, 0.01
    %v180 = vmul.f32 %v174, 0.01
    %v181 = vsel %vm177, %v169, %v179
    %v182 = vsel %vm178, %v174, %v180
    %v183 = vld [vmem:[#allocation7] sm:$0xff]
    %v184 = vld [vmem:[#allocation7 + $0x8] sm:$0xff]
    %v185 = vld [vmem:[#allocation7 + $0x10] sm:$0xff]
    %v186 = vld [vmem:[#allocation7 + $0x18] sm:$0xff]
    %v187 = vld [vmem:[#allocation7 + $0x20] sm:$0xff]
    %v188 = vld [vmem:[#allocation7 + $0x28] sm:$0xff]
    %v189 = vld [vmem:[#allocation7 + $0x30] sm:$0xff]
    %v190 = vld [vmem:[#allocation7 + $0x38] sm:$0xff]
    %v191 = vld [vmem:[#allocation7 + $0x40] sm:$0xff]
    %v192 = vld [vmem:[#allocation7 + $0x48] sm:$0xff]
    %v193 = vld [vmem:[#allocation7 + $0x50] sm:$0xff]
    %v194 = vld [vmem:[#allocation7 + $0x58] sm:$0xff]
    %v195 = vld [vmem:[#allocation7 + $0x60] sm:$0xff]
    %v196 = vld [vmem:[#allocation7 + $0x68] sm:$0xff]
    %v197 = vld [vmem:[#allocation7 + $0x70] sm:$0xff]
    %v198 = vld [vmem:[#allocation7 + $0x78] sm:$0xff]
    %v199 = vld [vmem:[%s4] sm:$0x1]
    %v201 = vlaneseq
    %v202 = vshrl.u32 %v201, 7
    %v203 = vsub.s32 0, %v202
    %v204 = vrot.slane %v199, %v203
    %206 = vmatprep.subr.mxu0 0.0
    %207 = vmatpush1.msra.mxu0 %v183
    %208 = vmatprep.subr.mxu0 0.0
    %209 = vmatpush1.msra.mxu0 %v184
    %210 = vmatprep.subr.mxu0 0.0
    %211 = vmatpush1.msra.mxu0 %v185
    %212 = vmatprep.subr.mxu0 0.0
    %213 = vmatpush1.msra.mxu0 %v186
    %214 = vmatprep.subr.mxu0 0.0
    %215 = vmatpush1.msra.mxu0 %v187
    %216 = vmatprep.subr.mxu0 0.0
    %217 = vmatpush1.msra.mxu0 %v188
    %218 = vmatprep.subr.mxu0 0.0
    %219 = vmatpush1.msra.mxu0 %v189
    %220 = vmatprep.subr.mxu0 0.0
    %221 = vmatpush1.msra.mxu0 %v190
    %222 = vmatprep.subr.mxu0 0.0
    %223 = vmatpush1.msra.mxu0 %v191
    %224 = vmatprep.subr.mxu0 0.0
    %225 = vmatpush1.msra.mxu0 %v192
    %226 = vmatprep.subr.mxu0 0.0
    %227 = vmatpush1.msra.mxu0 %v193
    %228 = vmatprep.subr.mxu0 0.0
    %229 = vmatpush1.msra.mxu0 %v194
    %230 = vmatprep.subr.mxu0 0.0
    %231 = vmatpush1.msra.mxu0 %v195
    %232 = vmatprep.subr.mxu0 0.0
    %233 = vmatpush1.msra.mxu0 %v196
    %234 = vmatprep.subr.mxu0 0.0
    %235 = vmatpush1.msra.mxu0 %v197
    %236 = vmatprep.subr.mxu0 0.0
    %237 = vmatpush1.msra.mxu0 %v198
    %238 = vmatprep.subr.mxu0 0.0
    %239 = vmatpush1.msra.mxu0 0.0
    %240 = vmatprep.subr.mxu0 0.0
    %241 = vmatpush1.msra.mxu0 0.0
    %242 = vmatprep.subr.mxu0 0.0
    %243 = vmatpush1.msra.mxu0 0.0
    %244 = vmatprep.subr.mxu0 0.0
    %245 = vmatpush1.msra.mxu0 0.0
    %246 = vmatprep.subr.mxu0 0.0
    %247 = vmatpush1.msra.mxu0 0.0
    %248 = vmatprep.subr.mxu0 0.0
    %249 = vmatpush1.msra.mxu0 0.0
    %250 = vmatprep.subr.mxu0 0.0
    %251 = vmatpush1.msra.mxu0 0.0
    %252 = vmatprep.subr.mxu0 0.0
    %253 = vmatpush1.msra.mxu0 0.0
    %254 = vmatprep.subr.mxu0 0.0
    %255 = vmatpush1.msra.mxu0 0.0
    %256 = vmatprep.subr.mxu0 0.0
    %257 = vmatpush1.msra.mxu0 0.0
    %258 = vmatprep.subr.mxu0 0.0
    %259 = vmatpush1.msra.mxu0 0.0
    %260 = vmatprep.subr.mxu0 0.0
    %261 = vmatpush1.msra.mxu0 0.0
    %262 = vmatprep.subr.mxu0 0.0
    %263 = vmatpush1.msra.mxu0 0.0
    %264 = vmatprep.subr.mxu0 0.0
    %265 = vmatpush1.msra.mxu0 0.0
    %266 = vmatprep.subr.mxu0 0.0
    %267 = vmatpush1.msra.mxu0 0.0
    %268 = vmatprep.subr.mxu0 0.0
    %269 = vmatpush1.msra.mxu0 0.0
    %270 = vmatprep.mubr.f32.mxu0 0.0
    %271 = vmatmul.mubr.f32.gmra.mrb[0].mxu0 %v181
    %v272 = vpop.f32.mrb[0].mxu0
    %v273 = vadd.f32 %v204, %v272
    %v274 = vpop.f32.mrb[0].mxu0
    %275 = vmatprep.mubr.f32.mxu0 0.0
    %276 = vmatmul.mubr.f32.gmra.mrb[0].mxu0 %v182
    %v277 = vpop.f32.mrb[0].mxu0
    %v278 = vadd.f32 %v204, %v277
    %v279 = vpop.f32.mrb[0].mxu0
    %280 = vdwg.mxu0
    %vm281 = vcmp.gt.f32.partialorder %v273, 0.0
    %vm282 = vcmp.gt.f32.partialorder %v278, 0.0
    %v283 = vmul.f32 %v273, 0.01
    %v284 = vmul.f32 %v278, 0.01
    %v285 = vsel %vm281, %v273, %v283
    %v286 = vsel %vm282, %v278, %v284
    %v287 = vld [vmem:[#allocation8] sm:$0xff]
    %v288 = vld [vmem:[#allocation8 + $0x8] sm:$0xff]
    %v289 = vld [vmem:[#allocation8 + $0x10] sm:$0xff]
    %v290 = vld [vmem:[#allocation8 + $0x18] sm:$0xff]
    %v291 = vld [vmem:[#allocation8 + $0x20] sm:$0xff]
    %v292 = vld [vmem:[#allocation8 + $0x28] sm:$0xff]
    %v293 = vld [vmem:[#allocation8 + $0x30] sm:$0xff]
    %v294 = vld [vmem:[#allocation8 + $0x38] sm:$0xff]
    %v295 = vld [vmem:[#allocation8 + $0x40] sm:$0xff]
    %v296 = vld [vmem:[#allocation8 + $0x48] sm:$0xff]
    %v297 = vld [vmem:[#allocation8 + $0x50] sm:$0xff]
    %v298 = vld [vmem:[#allocation8 + $0x58] sm:$0xff]
    %v299 = vld [vmem:[#allocation8 + $0x60] sm:$0xff]
    %v300 = vld [vmem:[#allocation8 + $0x68] sm:$0xff]
    %v301 = vld [vmem:[#allocation8 + $0x70] sm:$0xff]
    %v302 = vld [vmem:[#allocation8 + $0x78] sm:$0xff]
    %v303 = vld [vmem:[%s6] sm:$0x1]
    %v305 = vlaneseq
    %v306 = vshrl.u32 %v305, 7
    %v307 = vsub.s32 0, %v306
    %v308 = vrot.slane %v303, %v307
    %310 = vmatprep.subr.mxu0 0.0
    %311 = vmatpush1.msra.mxu0 %v287
    %312 = vmatprep.subr.mxu0 0.0
    %313 = vmatpush1.msra.mxu0 %v288
    %314 = vmatprep.subr.mxu0 0.0
    %315 = vmatpush1.msra.mxu0 %v289
    %316 = vmatprep.subr.mxu0 0.0
    %317 = vmatpush1.msra.mxu0 %v290
    %318 = vmatprep.subr.mxu0 0.0
    %319 = vmatpush1.msra.mxu0 %v291
    %320 = vmatprep.subr.mxu0 0.0
    %321 = vmatpush1.msra.mxu0 %v292
    %322 = vmatprep.subr.mxu0 0.0
    %323 = vmatpush1.msra.mxu0 %v293
    %324 = vmatprep.subr.mxu0 0.0
    %325 = vmatpush1.msra.mxu0 %v294
    %326 = vmatprep.subr.mxu0 0.0
    %327 = vmatpush1.msra.mxu0 %v295
    %328 = vmatprep.subr.mxu0 0.0
    %329 = vmatpush1.msra.mxu0 %v296
    %330 = vmatprep.subr.mxu0 0.0
    %331 = vmatpush1.msra.mxu0 %v297
    %332 = vmatprep.subr.mxu0 0.0
    %333 = vmatpush1.msra.mxu0 %v298
    %334 = vmatprep.subr.mxu0 0.0
    %335 = vmatpush1.msra.mxu0 %v299
    %336 = vmatprep.subr.mxu0 0.0
    %337 = vmatpush1.msra.mxu0 %v300
    %338 = vmatprep.subr.mxu0 0.0
    %339 = vmatpush1.msra.mxu0 %v301
    %340 = vmatprep.subr.mxu0 0.0
    %341 = vmatpush1.msra.mxu0 %v302
    %342 = vmatprep.subr.mxu0 0.0
    %343 = vmatpush1.msra.mxu0 0.0
    %344 = vmatprep.subr.mxu0 0.0
    %345 = vmatpush1.msra.mxu0 0.0
    %346 = vmatprep.subr.mxu0 0.0
    %347 = vmatpush1.msra.mxu0 0.0
    %348 = vmatprep.subr.mxu0 0.0
    %349 = vmatpush1.msra.mxu0 0.0
    %350 = vmatprep.subr.mxu0 0.0
    %351 = vmatpush1.msra.mxu0 0.0
    %352 = vmatprep.subr.mxu0 0.0
    %353 = vmatpush1.msra.mxu0 0.0
    %354 = vmatprep.subr.mxu0 0.0
    %355 = vmatpush1.msra.mxu0 0.0
    %356 = vmatprep.subr.mxu0 0.0
    %357 = vmatpush1.msra.mxu0 0.0
    %358 = vmatprep.subr.mxu0 0.0
    %359 = vmatpush1.msra.mxu0 0.0
    %360 = vmatprep.subr.mxu0 0.0
    %361 = vmatpush1.msra.mxu0 0.0
    %362 = vmatprep.subr.mxu0 0.0
    %363 = vmatpush1.msra.mxu0 0.0
    %364 = vmatprep.subr.mxu0 0.0
    %365 = vmatpush1.msra.mxu0 0.0
    %366 = vmatprep.subr.mxu0 0.0
    %367 = vmatpush1.msra.mxu0 0.0
    %368 = vmatprep.subr.mxu0 0.0
    %369 = vmatpush1.msra.mxu0 0.0
    %370 = vmatprep.subr.mxu0 0.0
    %371 = vmatpush1.msra.mxu0 0.0
    %372 = vmatprep.subr.mxu0 0.0
    %373 = vmatpush1.msra.mxu0 0.0
    %374 = vmatprep.mubr.f32.mxu0 0.0
    %375 = vmatmul.mubr.f32.gmra.mrb[0].mxu0 %v285
    %v376 = vpop.f32.mrb[0].mxu0
    %v377 = vadd.f32 %v308, %v376
    %v378 = vpop.f32.mrb[0].mxu0
    %379 = vmatprep.mubr.f32.mxu0 0.0
    %380 = vmatmul.mubr.f32.gmra.mrb[0].mxu0 %v286
    %v381 = vpop.f32.mrb[0].mxu0
    %v382 = vadd.f32 %v308, %v381
    %v383 = vpop.f32.mrb[0].mxu0
    %384 = vdwg.mxu0
    %385 = vxpose.xlu0.b32.start [1/16] %v377, 128
    %386 = vxpose.xlu0.b32.cont [2/16] %v382, 128
    %387 = vxpose.xlu0.b32.cont [3/16] 0.0, 128
    %388 = vxpose.xlu0.b32.cont [4/16] 0.0, 128
    %389 = vxpose.xlu0.b32.cont [5/16] 0.0, 128
    %390 = vxpose.xlu0.b32.cont [6/16] 0.0, 128
    %391 = vxpose.xlu0.b32.cont [7/16] 0.0, 128
    %392 = vxpose.xlu0.b32.cont [8/16] 0.0, 128
    %393 = vxpose.xlu0.b32.cont [9/16] 0.0, 128
    %394 = vxpose.xlu0.b32.cont [10/16] 0.0, 128
    %395 = vxpose.xlu0.b32.cont [11/16] 0.0, 128
    %396 = vxpose.xlu0.b32.cont [12/16] 0.0, 128
    %397 = vxpose.xlu0.b32.cont [13/16] 0.0, 128
    %398 = vxpose.xlu0.b32.cont [14/16] 0.0, 128
    %399 = vxpose.xlu0.b32.cont [15/16] 0.0, 128
    %400 = vxpose.xlu0.b32.end [16/16] 0.0, 128
    %v401 = vpop.trf.xlu0
    %v402 = vpop.trf.xlu0
    %v403 = vpop.trf.xlu0
    %v404 = vpop.trf.xlu0
    %v405 = vpop.trf.xlu0
    %v406 = vpop.trf.xlu0
    %v407 = vpop.trf.xlu0
    %v408 = vpop.trf.xlu0
    %v409 = vpop.trf.xlu0
    %v410 = vpop.trf.xlu0
    %v411 = vpop.trf.xlu0
    %v412 = vpop.trf.xlu0
    %v413 = vpop.trf.xlu0
    %v414 = vpop.trf.xlu0
    %v415 = vpop.trf.xlu0
    %v416 = vpop.trf.xlu0
    %vm417 = vcmask 130048
    %418 = vst.msk [vmem:[#allocation10] sm:$0xff] %vm417, %v401
    %419 = vst.msk [vmem:[#allocation10 + $0x8] sm:$0xff] %vm417, %v402
    // Predicated region
    $region46: #{tpu_custom_call.1} parent=1 // pred_check
      _
    $region47: #{tpu_custom_call.1} parent=1 // pred_check_branch
      %421 = sbr.rel (0) target = $region49
    $region48: #{tpu_custom_call.1} parent=1 // pred_region
      %s423 = ssub.s32 256, 256
      %424 = vsyncadd [#allocation4], %s423
      %s425 = sshll.u32 [#allocation10], 4
      %s426 = int_to_ptr.vmem [resolvable:$true] %s425
      %431 = dma.vmem_to_hbm [thread:$0]  %s426, 256, %s7, [#allocation4], 128, 128, 8
    $region49: #{tpu_custom_call.1} parent=1 // pred_fallthru
      _
    // Predicated region
    $region50: #{tpu_custom_call.1} parent=1 // pred_check
      _
    $region51: #{tpu_custom_call.1} parent=1 // pred_check_branch
      %433 = sbr.rel (0) target = $region53
    $region52: #{tpu_custom_call.1} parent=1 // pred_region
      %434 = dma.done [#allocation4], 256
    $region53: #{tpu_custom_call.1} parent=1 // pred_fallthru
      _
    %435 = vsyncpa [#allocation3], 1
    %436 = vsyncpa [#allocation6], 1
    %437 = vsyncpa [#allocation9], 1
    %438 = vsyncpa [#allocation4], 1

</llo_original>
